<compile_context>
chip_gen: v7x
topology: tpu7x:2x2x1
jax: 0.10.0
libtpu: 0.0.40
codegen_flags: <defaults>
</compile_context>

<pallas_src>
import jax
import jax.numpy as jnp
from jax.experimental import pallas as pl
from jax.experimental.pallas import tpu as pltpu


# ---------------------------------------------------------------------------
# Kernels
# ---------------------------------------------------------------------------

def _nonlocal_kernel_fused(x_ref, sp_ref, gw_ref, vth_ref, beff_ref, z_ref):
    """Fused form (used when C >= M): z^T = x^T + (W_eff^T @ g) @ f^T + b_eff."""
    x = x_ref[...]                                                # (C, TN) f32
    # s_theta for this query tile (theta 1x1 conv folded to a C->1 projection).
    st = jnp.sum(x * vth_ref[...], axis=0, keepdims=True)        # (1, TN) f32
    # s_phi arrives lane-dense (1, M); move to sublane orientation once (XLU).
    sp = jnp.transpose(sp_ref[...])                               # (M, 1) f32
    # f^T[j, i] = relu(s_phi[j] + s_theta[i]); 1/M folded into the weights.
    # Broadcast-add + relu in bf16 so the (M, TN) intermediate never exists in f32.
    f_t = jnp.maximum(sp.astype(jnp.bfloat16) + st.astype(jnp.bfloat16), 0.0)
    wy = jnp.dot(gw_ref[...], f_t, preferred_element_type=jnp.float32)  # (C, TN)
    z_ref[...] = x + wy + beff_ref[...]


def _nonlocal_kernel_twostage(x_ref, sp_ref, g_ref, wef_ref, vth_ref, beff_ref,
                              z_ref, acc_ref):
    """Two-stage form (used when M > C), key axis tiled over grid axis 2:
       acc += g_k @ f_k^T ; finalize: z^T = x^T + W_eff^T @ acc + b_eff."""
    k = pl.program_id(2)
    nk = pl.num_programs(2)

    x = x_ref[...]                                                # (C, TN) f32
    st = jnp.sum(x * vth_ref[...], axis=0, keepdims=True)        # (1, TN) f32
    sp = jnp.transpose(sp_ref[...])                               # (TM, 1) f32
    f_t = jnp.maximum(sp.astype(jnp.bfloat16) + st.astype(jnp.bfloat16), 0.0)
    part = jnp.dot(g_ref[...], f_t,
                   preferred_element_type=jnp.float32)            # (Cint, TN) f32

    @pl.when(k == 0)
    def _():
        acc_ref[...] = part

    @pl.when(k != 0)
    def _():
        acc_ref[...] += part

    @pl.when(k == nk - 1)
    def _():
        # Small finalize matmul in f32 (single rounding stage on the g side).
        wy = jnp.dot(wef_ref[...], acc_ref[...],
                     preferred_element_type=jnp.float32)          # (C, TN)
        z_ref[...] = x + wy + beff_ref[...]


# ---------------------------------------------------------------------------
# Wrapper
# ---------------------------------------------------------------------------

def _pick_tile(n, cap):
    """Largest 128-multiple divisor of n that is <= cap, else the full extent."""
    cap = max(128, cap - cap % 128)
    if n <= cap:
        return n
    for t in range(cap, 0, -128):
        if n % t == 0:
            return t
    # No 128-aligned divisor: fall back to the full extent (always a legal block).
    # TODO(synk): pad to a multiple of 128 and mask the tail store for large ragged N.
    return n


def _vmem_limit(est_bytes):
    # Explicit scoped-VMEM limit (defaults: 16 MiB v5e, 32 MiB v6e/v7x).
    return int(min(100 * (1 << 20), max(32 * (1 << 20), 2 * est_bytes)))


def nonlocal_block_pallas(x, params, *, tn=None, tm=None):
    B, C, H, W = x.shape
    Cint = params["w_theta"].shape[0]
    assert H % 2 == 0 and W % 2 == 0, "sub_sample=True needs even spatial dims"
    N = H * W
    M = (H // 2) * (W // 2)

    if tn is None:
        tn = _pick_tile(N, 1024)
        # Keep both v7x TensorCores busy when the batch does not provide parallelism.
        if B == 1 and N // tn < 2 and N % 256 == 0:
            tn = max(128, N // 2)
    assert N % tn == 0
    if tm is None:
        tm = _pick_tile(M, 512)
    assert M % tm == 0

    x_cf = x.reshape(B, C, N)                        # free reshape, channels-first

    # concat_project weight split; fold 1/M into both halves (ReLU homogeneity).
    inv_m = 1.0 / M
    wc = params["w_concat"].reshape(2 * Cint)
    wc_t = wc[:Cint] * inv_m
    wc_p = wc[Cint:] * inv_m

    # theta branch folded: s_theta_i = v_theta . x_i + c_theta.
    v_theta = wc_t @ params["w_theta"]               # (C,)
    c_theta = jnp.dot(wc_t, params["b_theta"])       # scalar (folded into s_phi)

    def conv1x1(inp, w, b):
        return jnp.einsum("bchw,oc->bohw", inp, w) + b[None, :, None, None]

    def maxpool2(v):
        b_, c_, h_, w_ = v.shape
        return v.reshape(b_, c_, h_ // 2, 2, w_ // 2, 2).max(axis=(3, 5))

    # phi / g branches (sub-sampled), kept channels-first.
    phi = maxpool2(conv1x1(x, params["w_phi"], params["b_phi"])).reshape(B, Cint, M)
    g = maxpool2(conv1x1(x, params["w_g"], params["b_g"])).reshape(B, Cint, M)

    # Lane-dense s_phi: (B, 1, M).
    s_phi = (jnp.einsum("bcm,c->bm", phi, wc_p) + c_theta) \
        .reshape(B, 1, M).astype(jnp.float32)

    # Fold the final 1x1 conv W and eval-mode BatchNorm.
    scale = params["bn_gamma"] / jnp.sqrt(params["bn_var"] + 1e-5)    # (C,)
    w_eff_t = (params["w_W"] * scale[:, None]).astype(jnp.float32)    # (C, Cint)
    b_eff = ((params["b_W"] - params["bn_mean"]) * scale
             + params["bn_beta"]).reshape(C, 1).astype(jnp.float32)
    v_theta_col = v_theta.reshape(C, 1).astype(jnp.float32)

    if M > C:
        # ---- Two-stage form, key axis tiled over the grid ----
        g_bf = g.astype(jnp.bfloat16)                                 # (B, Cint, M)
        vmem_est = (4 * C * tn * 4            # x + z tiles, double-buffered
                    + 2 * Cint * tm * 2       # g tile, double-buffered (bf16)
                    + 2 * 8 * tm * 4          # s_phi tile, double-buffered
                    + tm * tn * 2             # f^T intermediate (bf16)
                    + Cint * tn * 4           # accumulator scratch
                    + C * Cint * 4 + 2 * C * 128 * 4)
        grid = (B, N // tn, M // tm)
        z_cf = pl.pallas_call(
            _nonlocal_kernel_twostage,
            out_shape=jax.ShapeDtypeStruct((B, C, N), jnp.float32),
            grid=grid,
            in_specs=[
                pl.BlockSpec((None, C, tn), lambda b, i, k: (b, 0, i)),     # x tile
                pl.BlockSpec((None, 1, tm), lambda b, i, k: (b, 0, k)),     # s_phi (lane-dense)
                pl.BlockSpec((None, Cint, tm), lambda b, i, k: (b, 0, k)),  # g tile (bf16)
                pl.BlockSpec((C, Cint), lambda b, i, k: (0, 0)),            # W_eff^T
                pl.BlockSpec((C, 1), lambda b, i, k: (0, 0)),               # folded theta proj
                pl.BlockSpec((C, 1), lambda b, i, k: (0, 0)),               # folded conv+BN bias
            ],
            out_specs=pl.BlockSpec((None, C, tn), lambda b, i, k: (b, 0, i)),
            scratch_shapes=[pltpu.VMEM((Cint, tn), jnp.float32)],
            compiler_params=pltpu.CompilerParams(
                dimension_semantics=("parallel", "parallel", "arbitrary"),
                vmem_limit_bytes=_vmem_limit(vmem_est)),
        )(x_cf, s_phi, g_bf, w_eff_t, v_theta_col, b_eff)
    else:
        # ---- Fused form (C >= M): pre-contract gw = W_eff^T @ g ----
        gw = jnp.einsum("oc,bcm->bom", w_eff_t, g).astype(jnp.bfloat16)  # (B, C, M)
        vmem_est = (4 * C * tn * 4
                    + 2 * C * M * 2           # gw block, double-buffered (bf16)
                    + 2 * 8 * M * 4           # s_phi block
                    + M * tn * 2              # f^T intermediate
                    + 2 * C * 128 * 4)
        grid = (B, N // tn)
        z_cf = pl.pallas_call(
            _nonlocal_kernel_fused,
            out_shape=jax.ShapeDtypeStruct((B, C, N), jnp.float32),
            grid=grid,
            in_specs=[
                pl.BlockSpec((None, C, tn), lambda b, i: (b, 0, i)),   # x tile
                pl.BlockSpec((None, 1, M), lambda b, i: (b, 0, 0)),    # s_phi (lane-dense)
                pl.BlockSpec((None, C, M), lambda b, i: (b, 0, 0)),    # W_eff^T @ g (bf16)
                pl.BlockSpec((C, 1), lambda b, i: (0, 0)),             # folded theta proj
                pl.BlockSpec((C, 1), lambda b, i: (0, 0)),             # folded conv+BN bias
            ],
            out_specs=pl.BlockSpec((None, C, tn), lambda b, i: (b, 0, i)),
            compiler_params=pltpu.CompilerParams(
                dimension_semantics=("parallel", "parallel"),
                vmem_limit_bytes=_vmem_limit(vmem_est)),
        )(x_cf, s_phi, gw, v_theta_col, b_eff)

    return z_cf.reshape(B, C, H, W)


# ---------------------------------------------------------------------------
# Pure-JAX reference (transcription of the PyTorch forward, eval-mode BN)
# ---------------------------------------------------------------------------

def nonlocal_block_reference(x, params):
    B, C, H, W = x.shape
    Cint = params["w_theta"].shape[0]

    def conv1x1(inp, w, b=None):
        out = jnp.einsum("bchw,oc->bohw", inp, w)
        if b is not None:
            out = out + b[None, :, None, None]
        return out

    def maxpool2(v):
        b_, c_, h_, w_ = v.shape
        return v.reshape(b_, c_, h_ // 2, 2, w_ // 2, 2).max(axis=(3, 5))

    g_x = maxpool2(conv1x1(x, params["w_g"], params["b_g"])).reshape(B, Cint, -1)
    g_x = g_x.transpose(0, 2, 1)                                      # (B, M, Cint)
    theta_x = conv1x1(x, params["w_theta"], params["b_theta"]).reshape(B, Cint, -1, 1)
    phi_x = maxpool2(conv1x1(x, params["w_phi"], params["b_phi"])).reshape(B, Cint, 1, -1)
    h, w = theta_x.shape[2], phi_x.shape[3]
    concat = jnp.concatenate([jnp.broadcast_to(theta_x, (B, Cint, h, w)),
                              jnp.broadcast_to(phi_x, (B, Cint, h, w))], axis=1)
    f = jax.nn.relu(jnp.einsum("bchw,oc->bohw", concat,
                               params["w_concat"].reshape(1, 2 * Cint)))
    f = f.reshape(B, h, w)
    y = jnp.matmul(f / w, g_x)                                        # (B, N, Cint)
    y_map = y.transpose(0, 2, 1).reshape(B, Cint, H, W)
    W_y = conv1x1(y_map, params["w_W"], params["b_W"])
    scale = params["bn_gamma"] / jnp.sqrt(params["bn_var"] + 1e-5)
    W_y = W_y * scale[None, :, None, None] + \
        (params["bn_beta"] - params["bn_mean"] * scale)[None, :, None, None]
    return W_y + x


# ---------------------------------------------------------------------------
# Demo / self-test
# ---------------------------------------------------------------------------

def _make_params(key, C, Cint):
    ks = jax.random.split(key, 14)
    return {
        "w_theta": jax.random.normal(ks[0], (Cint, C), jnp.float32) * 0.1,
        "b_theta": jax.random.normal(ks[1], (Cint,), jnp.float32) * 0.1,
        "w_phi":   jax.random.normal(ks[2], (Cint, C), jnp.float32) * 0.1,
        "b_phi":   jax.random.normal(ks[3], (Cint,), jnp.float32) * 0.1,
        "w_g":     jax.random.normal(ks[4], (Cint, C), jnp.float32) * 0.1,
        "b_g":     jax.random.normal(ks[5], (Cint,), jnp.float32) * 0.1,
        "w_concat": jax.random.normal(ks[6], (1, 2 * Cint), jnp.float32) * 0.1,
        "w_W":     jax.random.normal(ks[7], (C, Cint), jnp.float32) * 0.1,
        "b_W":     jax.random.normal(ks[8], (C,), jnp.float32) * 0.1,
        # Non-trivial BN params so the folded conv+BN path is numerically exercised
        # (the module's init sets gamma/beta to 0, which would make z == x exactly).
        "bn_gamma": 0.5 + 0.1 * jax.random.normal(ks[10], (C,), jnp.float32),
        "bn_beta":  0.1 * jax.random.normal(ks[11], (C,), jnp.float32),
        "bn_mean":  0.1 * jax.random.normal(ks[12], (C,), jnp.float32),
        "bn_var":   1.0 + 0.1 * jnp.abs(jax.random.normal(ks[13], (C,), jnp.float32)),
    }


if __name__ == "__main__":
    key = jax.random.PRNGKey(0)
    k1, k2, k3, k4 = jax.random.split(key, 4)

    # Case 1: M > C -> two-stage, M-tiled kernel (the common non-local regime).
    B, C, H, W = 2, 4, 16, 16
    params1 = _make_params(k1, C, C // 2)
    x1 = jax.random.normal(k2, (B, C, H, W), jnp.float32)
    z1 = nonlocal_block_pallas(x1, params1)
    jax.block_until_ready(z1)
    z1_ref = nonlocal_block_reference(x1, params1)
    assert jnp.allclose(z1, z1_ref, atol=1e-2, rtol=1e-2), "z mismatch (two-stage path)"

    # Case 2: C >= M -> fused single-matmul kernel.
    B2, C2, H2, W2 = 1, 64, 8, 8
    params2 = _make_params(k3, C2, C2 // 2)
    x2 = jax.random.normal(k4, (B2, C2, H2, W2), jnp.float32)
    z2 = nonlocal_block_pallas(x2, params2)
    jax.block_until_ready(z2)
    z2_ref = nonlocal_block_reference(x2, params2)
    assert jnp.allclose(z2, z2_ref, atol=1e-2, rtol=1e-2), "z mismatch (fused path)"

    print("KERNEL_OK")
</pallas_src>

<mosaic_0001>
module attributes {stable_mosaic.version = 11 : i64} {
  func.func @_nonlocal_kernel_twostage(%arg0: i32, %arg1: i32, %arg2: i32, %arg3: memref<1x4x256xf32, #tpu.memory_space<vmem>>, %arg4: memref<1x1x64xf32, #tpu.memory_space<vmem>>, %arg5: memref<1x2x64xbf16, #tpu.memory_space<vmem>>, %arg6: memref<4x2xf32, #tpu.memory_space<vmem>>, %arg7: memref<4x1xf32, #tpu.memory_space<vmem>>, %arg8: memref<4x1xf32, #tpu.memory_space<vmem>>, %arg9: memref<1x4x256xf32, #tpu.memory_space<vmem>>, %arg10: memref<2x256xf32, #tpu.memory_space<vmem>>) attributes {dimension_semantics = [#tpu.dimension_semantics<parallel>, #tpu.dimension_semantics<parallel>, #tpu.dimension_semantics<arbitrary>], iteration_bounds = array<i64: 2, 1, 1>, scalar_prefetch = 0 : i64, scratch_operands = 1 : i64, tpu.core_type = #tpu.core_type<tc>, window_params = [{transform_indices = @transform_0, window_bounds = array<i64: 1, 4, 256>}, {transform_indices = @transform_1, window_bounds = array<i64: 1, 1, 64>}, {transform_indices = @transform_2, window_bounds = array<i64: 1, 2, 64>}, {pipeline_mode = #tpu.pipeline_mode<synchronous>, transform_indices = @transform_3, window_bounds = array<i64: 4, 2>}, {pipeline_mode = #tpu.pipeline_mode<synchronous>, transform_indices = @transform_4, window_bounds = array<i64: 4, 1>}, {pipeline_mode = #tpu.pipeline_mode<synchronous>, transform_indices = @transform_5, window_bounds = array<i64: 4, 1>}, {transform_indices = @transform_6, window_bounds = array<i64: 1, 4, 256>}]} {
    %c0 = arith.constant 0 : index
    %c0_0 = arith.constant 0 : index
    %c0_1 = arith.constant 0 : index
    %0 = vector.load %arg3[%c0, %c0_0, %c0_1] : memref<1x4x256xf32, #tpu.memory_space<vmem>>, vector<1x4x256xf32>
    %1 = vector.shape_cast %0 : vector<1x4x256xf32> to vector<4x256xf32>
    %c0_2 = arith.constant 0 : index
    %c0_3 = arith.constant 0 : index
    %2 = vector.load %arg7[%c0_2, %c0_3] : memref<4x1xf32, #tpu.memory_space<vmem>>, vector<4x1xf32>
    %3 = vector.broadcast %2 : vector<4x1xf32> to vector<4x256xf32>
    %4 = arith.mulf %1, %3 : vector<4x256xf32>
    %cst = arith.constant dense<0.000000e+00> : vector<256xf32>
    %5 = vector.multi_reduction <add>, %4, %cst [0] : vector<4x256xf32> to vector<256xf32>
    %6 = vector.shape_cast %5 : vector<256xf32> to vector<1x256xf32>
    %c0_4 = arith.constant 0 : index
    %c0_5 = arith.constant 0 : index
    %c0_6 = arith.constant 0 : index
    %7 = vector.load %arg4[%c0_4, %c0_5, %c0_6] : memref<1x1x64xf32, #tpu.memory_space<vmem>>, vector<1x1x64xf32>
    %8 = vector.shape_cast %7 : vector<1x1x64xf32> to vector<1x64xf32>
    %9 = tpu.transpose %8, [1, 0] : vector<1x64xf32> -> vector<64x1xf32>
    %10 = arith.truncf %9 : vector<64x1xf32> to vector<64x1xbf16>
    %11 = arith.truncf %6 : vector<1x256xf32> to vector<1x256xbf16>
    %12 = vector.broadcast %10 : vector<64x1xbf16> to vector<64x256xbf16>
    %13 = vector.broadcast %11 : vector<1x256xbf16> to vector<64x256xbf16>
    %14 = arith.addf %12, %13 : vector<64x256xbf16>
    %cst_7 = arith.constant 0.000000e+00 : bf16
    %15 = vector.broadcast %cst_7 : bf16 to vector<64x256xbf16>
    %16 = arith.maximumf %14, %15 : vector<64x256xbf16>
    %c0_8 = arith.constant 0 : index
    %c0_9 = arith.constant 0 : index
    %c0_10 = arith.constant 0 : index
    %17 = vector.load %arg5[%c0_8, %c0_9, %c0_10] : memref<1x2x64xbf16, #tpu.memory_space<vmem>>, vector<1x2x64xbf16>
    %18 = vector.shape_cast %17 : vector<1x2x64xbf16> to vector<2x64xbf16>
    %cst_11 = arith.constant dense<0.000000e+00> : vector<2x256xf32>
    %19 = tpu.matmul %18, %16, %cst_11 {dimension_numbers = #tpu.dot_dimension_numbers<[1], [0], [0], [1], [0, 0, 1, 1], [], []>} : vector<2x64xbf16>, vector<64x256xbf16>, vector<2x256xf32> -> vector<2x256xf32>
    %c0_i32 = arith.constant 0 : i32
    %20 = arith.cmpi eq, %arg2, %c0_i32 : i32
    %21 = arith.extui %20 : i1 to i32
    %c0_i32_12 = arith.constant 0 : i32
    %22 = arith.cmpi ne, %21, %c0_i32_12 : i32
    scf.if %22 {
      %c0_17 = arith.constant 0 : index
      %c0_18 = arith.constant 0 : index
      %29 = vector.load %arg10[%c0_17, %c0_18] : memref<2x256xf32, #tpu.memory_space<vmem>>, vector<2x256xf32>
      tpu.vector_store %arg10[%c0_17, %c0_18], %19 {strides = array<i32>} : memref<2x256xf32, #tpu.memory_space<vmem>>, vector<2x256xf32>,
    } else {
    }
    %c0_i32_13 = arith.constant 0 : i32
    %23 = arith.cmpi ne, %arg2, %c0_i32_13 : i32
    %24 = arith.extui %23 : i1 to i32
    %c0_i32_14 = arith.constant 0 : i32
    %25 = arith.cmpi ne, %24, %c0_i32_14 : i32
    scf.if %25 {
      %c0_17 = arith.constant 0 : index
      %c0_18 = arith.constant 0 : index
      %29 = vector.load %arg10[%c0_17, %c0_18] : memref<2x256xf32, #tpu.memory_space<vmem>>, vector<2x256xf32>
      %30 = arith.addf %29, %19 : vector<2x256xf32>
      %c0_19 = arith.constant 0 : index
      %c0_20 = arith.constant 0 : index
      %31 = vector.load %arg10[%c0_19, %c0_20] : memref<2x256xf32, #tpu.memory_space<vmem>>, vector<2x256xf32>
      tpu.vector_store %arg10[%c0_19, %c0_20], %30 {strides = array<i32>} : memref<2x256xf32, #tpu.memory_space<vmem>>, vector<2x256xf32>,
    } else {
    }
    %c0_i32_15 = arith.constant 0 : i32
    %26 = arith.cmpi eq, %arg2, %c0_i32_15 : i32
    %27 = arith.extui %26 : i1 to i32
    %c0_i32_16 = arith.constant 0 : i32
    %28 = arith.cmpi ne, %27, %c0_i32_16 : i32
    scf.if %28 {
      %c0_17 = arith.constant 0 : index
      %c0_18 = arith.constant 0 : index
      %29 = vector.load %arg6[%c0_17, %c0_18] : memref<4x2xf32, #tpu.memory_space<vmem>>, vector<4x2xf32>
      %c0_19 = arith.constant 0 : index
      %c0_20 = arith.constant 0 : index
      %30 = vector.load %arg10[%c0_19, %c0_20] : memref<2x256xf32, #tpu.memory_space<vmem>>, vector<2x256xf32>
      %cst_21 = arith.constant dense<0.000000e+00> : vector<4x256xf32>
      %31 = tpu.matmul %29, %30, %cst_21 {dimension_numbers = #tpu.dot_dimension_numbers<[1], [0], [0], [1], [0, 0, 1, 1], [], []>} : vector<4x2xf32>, vector<2x256xf32>, vector<4x256xf32> -> vector<4x256xf32>
      %32 = arith.addf %1, %31 : vector<4x256xf32>
      %c0_22 = arith.constant 0 : index
      %c0_23 = arith.constant 0 : index
      %33 = vector.load %arg8[%c0_22, %c0_23] : memref<4x1xf32, #tpu.memory_space<vmem>>, vector<4x1xf32>
      %34 = vector.broadcast %33 : vector<4x1xf32> to vector<4x256xf32>
      %35 = arith.addf %32, %34 : vector<4x256xf32>
      %c0_24 = arith.constant 0 : index
      %c0_25 = arith.constant 0 : index
      %c0_26 = arith.constant 0 : index
      %36 = vector.load %arg9[%c0_24, %c0_25, %c0_26] : memref<1x4x256xf32, #tpu.memory_space<vmem>>, vector<1x4x256xf32>
      %37 = vector.shape_cast %36 : vector<1x4x256xf32> to vector<4x256xf32>
      %38 = vector.shape_cast %35 : vector<4x256xf32> to vector<1x4x256xf32>
      tpu.vector_store %arg9[%c0_24, %c0_25, %c0_26], %38 {strides = array<i32>} : memref<1x4x256xf32, #tpu.memory_space<vmem>>, vector<1x4x256xf32>,
    } else {
    }
    return
  }
  func.func @transform_0(%arg0: i32, %arg1: i32, %arg2: i32) -> (i32, i32, i32) {
    %c0_i32 = arith.constant 0 : i32
    %c0_i32_0 = arith.constant 0 : i32
    return %arg0, %c0_i32, %arg1 : i32, i32, i32
  }
  func.func @transform_1(%arg0: i32, %arg1: i32, %arg2: i32) -> (i32, i32, i32) {
    %c0_i32 = arith.constant 0 : i32
    %c0_i32_0 = arith.constant 0 : i32
    return %arg0, %c0_i32, %arg2 : i32, i32, i32
  }
  func.func @transform_2(%arg0: i32, %arg1: i32, %arg2: i32) -> (i32, i32, i32) {
    %c0_i32 = arith.constant 0 : i32
    %c0_i32_0 = arith.constant 0 : i32
    return %arg0, %c0_i32, %arg2 : i32, i32, i32
  }
  func.func @transform_3(%arg0: i32, %arg1: i32, %arg2: i32) -> (i32, i32) {
    %c0_i32 = arith.constant 0 : i32
    %c0_i32_0 = arith.constant 0 : i32
    %c0_i32_1 = arith.constant 0 : i32
    return %c0_i32, %c0_i32_0 : i32, i32
  }
  func.func @transform_4(%arg0: i32, %arg1: i32, %arg2: i32) -> (i32, i32) {
    %c0_i32 = arith.constant 0 : i32
    %c0_i32_0 = arith.constant 0 : i32
    %c0_i32_1 = arith.constant 0 : i32
    return %c0_i32, %c0_i32_0 : i32, i32
  }
  func.func @transform_5(%arg0: i32, %arg1: i32, %arg2: i32) -> (i32, i32) {
    %c0_i32 = arith.constant 0 : i32
    %c0_i32_0 = arith.constant 0 : i32
    %c0_i32_1 = arith.constant 0 : i32
    return %c0_i32, %c0_i32_0 : i32, i32
  }
  func.func @transform_6(%arg0: i32, %arg1: i32, %arg2: i32) -> (i32, i32, i32) {
    %c0_i32 = arith.constant 0 : i32
    %c0_i32_0 = arith.constant 0 : i32
    return %arg0, %c0_i32, %arg1 : i32, i32, i32
  }
}

</mosaic_0001>

<llo_original>
// kernel: tpu_custom_call.1
$region0: #{tpu_custom_call.1}
  #allocation0 [shape = 'u32[]', space=smem, size = 0x4, offset = 0x4, fixed_abs, tag = 'smem constant byte address 0x4 - core index']
  #allocation1 [shape = 'u32[144,128]{1,0:T(1,128)}', space=vmem, size = 0x12000, scoped, tag = 'internal scratch']
  #allocation2 [shape = 'f32[2,256]{1,0:T(2,128)}', space=vmem, size = 0x800, scoped, tag = 'scratch operand']
  %s0 = inlined_call_operand.hbm [shape: f32[2,4,256], index: 0, kind: input, shape index: {}]
  %s1 = inlined_call_operand.vmem [shape: f32[2,1,64], index: 1, kind: input, shape index: {}]
  %s2 = inlined_call_operand.vmem [shape: bf16[2,2,64], index: 2, kind: input, shape index: {}]
  %s3 = inlined_call_operand.vmem [shape: f32[4,2], index: 3, kind: input, shape index: {}]
  %s4 = inlined_call_operand.vmem [shape: f32[4,1], index: 4, kind: input, shape index: {}]
  %s5 = inlined_call_operand.vmem [shape: f32[4,1], index: 5, kind: input, shape index: {}]
  %s6 = inlined_call_operand.hbm [shape: f32[2,4,256], index: 6, kind: output, shape index: {}]
  %s7 = sld [smem:[#allocation0]]
  $region73: #{tpu_custom_call.1} parent=0
    _
  %s9 = ssub.s32 1, %s7
  %s10 = scalar_select 0, %s9, %s7
  $region1: #{tpu_custom_call.1} parent=0
    #allocation3 [shape = 'u8[8192]{0}', space=vmem, size = 0x2000, scoped, tag = 'input window, operand 0']
    #allocation4 [shape = 's32[2]{0}', space=sflag, size = 0x8, scoped, tag = 'scoped memory for tpu_custom_call.1']
    #allocation5 [shape = 's32[2]{0}', space=sflag, size = 0x8, scoped, tag = 'scoped memory for tpu_custom_call.1']
    #allocation6 [shape = 'u8[8192]{0}', space=vmem, size = 0x2000, scoped, tag = 'output window, operand 0']
    %11 = vsyncpa [#allocation4], 0
    %s12 = scalar_lea.sflag [#allocation4], 1
    %13 = vsyncpa %s12, 0
    %14 = vsyncpa [#allocation5], 0
    %s15 = scalar_lea.sflag [#allocation5], 1
    %16 = vsyncpa %s15, 0
    loop: start=0, step=1, limit=4
    $region2: #{tpu_custom_call.1} parent=1 // loop_pre_header
      _
    $region3: #{tpu_custom_call.1} parent=1 // loop_header
      %s18 = sphi 0, %s22
      %p19 = scmp.ge.s32.totalorder %s18, 4
      %s25 = sphi 0, %s44
      %s26 = sphi 0, %s40
      %s27 = sphi 0, %s36
      %s28 = sphi 0, %s25
      %s29 = sphi 0, %s26
      %s30 = sphi 0, %s27
      %s31 = sphi 0, %s28
      %s32 = sphi 0, %s29
      %s33 = sphi 0, %s30
      %s49 = sphi 0, %s51
      %s52 = sphi 0, %s49
      %s53 = sphi 0, %s52
      %s69 = sphi 0, %s53
      %s77 = sphi 0, %s79
      %s80 = sphi 0, %s77
      %s81 = sphi 0, %s80
      %s97 = sphi 0, %s81
      %s105 = sphi 0, %s107
      %s108 = sphi 0, %s105
      %s109 = sphi 0, %s108
      %s125 = sphi 0, %s109
      %s129 = sphi 0, %s129
      %s131 = sphi 0, %s129
      %s132 = sphi 0, %s131
      %s146 = sphi 0, %s132
      %s150 = sphi 0, %s150
      %s152 = sphi 0, %s150
      %s153 = sphi 0, %s152
      %s167 = sphi 0, %s153
      %s171 = sphi 0, %s171
      %s173 = sphi 0, %s171
      %s174 = sphi 0, %s173
      %s188 = sphi 0, %s174
      %s196 = sphi 0, %s198
      %s199 = sphi 0, %s196
      %s200 = sphi 0, %s199
      %s216 = sphi 0, %s200
    $region4: #{tpu_custom_call.1} parent=1 // loop_header_branch
      %21 = sbr.rel (%p19) target = $region8
    $region5: #{tpu_custom_call.1} parent=1 // loop_body
      %s23 = ssub.s32 %s18, 1
      %s24 = ssub.s32 %s18, 2
      %s34 = sadd.s32 1, %s27
      %p35 = scmp.ge.s32.totalorder %s34, 1
      %s36 = scalar_select %p35, 0, %s34
      %s37 = sadd.s32 1, %s26
      %s38 = scalar_select %p35, %s37, %s26
      %p39 = scmp.ge.s32.totalorder %s38, 1
      %s40 = scalar_select %p39, 0, %s38
      %s41 = sadd.s32 1, %s25
      %s42 = scalar_select %p39, %s41, %s25
      %p43 = scmp.ge.s32.totalorder %s42, 2
      %s44 = scalar_select %p43, 0, %s42
      %s45 = ssub.s32 %s25, %s44
      %s46 = ssub.s32 %s26, %s40
      %s47 = sor.u32 %s45, %s46
      %p48 = scmp.eq.s32.totalorder %s47, 0
      %s50 = sadd.s32 %s49, 1
      %s51 = scalar_select %p48, %s49, %s50
      %p54 = pneg %p48
      %p55 = scmp.eq.s32.totalorder %s18, 1
      %p56 = por %p54, %p55
      %p57 = scmp.ne.s32.totalorder %s49, %s52
      %p58 = scmp.eq.s32.totalorder %s18, 0
      %p59 = por %p57, %p58
      %p60 = scmp.ne.s32.totalorder %s49, %s52
      %p61 = scmp.eq.s32.totalorder %s23, 1
      %p62 = por %p60, %p61
      %p63 = scmp.ne.s32.totalorder %s52, %s53
      %p64 = scmp.eq.s32.totalorder %s23, 0
      %p65 = por %p63, %p64
      %p66 = scmp.ne.s32.totalorder %s52, %s53
      %p67 = scmp.eq.s32.totalorder %s24, 1
      %p68 = por %p66, %p67
      %p70 = scmp.ne.s32.totalorder %s53, %s69
      %p71 = scmp.eq.s32.totalorder %s24, 0
      %p72 = por %p70, %p71
      %s73 = ssub.s32 %s25, %s44
      %s74 = ssub.s32 %s27, %s36
      %s75 = sor.u32 %s73, %s74
      %p76 = scmp.eq.s32.totalorder %s75, 0
      %s78 = sadd.s32 %s77, 1
      %s79 = scalar_select %p76, %s77, %s78
      %p82 = pneg %p76
      %p83 = scmp.eq.s32.totalorder %s18, 1
      %p84 = por %p82, %p83
      %p85 = scmp.ne.s32.totalorder %s77, %s80
      %p86 = scmp.eq.s32.totalorder %s18, 0
      %p87 = por %p85, %p86
      %p88 = scmp.ne.s32.totalorder %s77, %s80
      %p89 = scmp.eq.s32.totalorder %s23, 1
      %p90 = por %p88, %p89
      %p91 = scmp.ne.s32.totalorder %s80, %s81
      %p92 = scmp.eq.s32.totalorder %s23, 0
      %p93 = por %p91, %p92
      %p94 = scmp.ne.s32.totalorder %s80, %s81
      %p95 = scmp.eq.s32.totalorder %s24, 1
      %p96 = por %p94, %p95
      %p98 = scmp.ne.s32.totalorder %s81, %s97
      %p99 = scmp.eq.s32.totalorder %s24, 0
      %p100 = por %p98, %p99
      %s101 = ssub.s32 %s25, %s44
      %s102 = ssub.s32 %s27, %s36
      %s103 = sor.u32 %s101, %s102
      %p104 = scmp.eq.s32.totalorder %s103, 0
      %s106 = sadd.s32 %s105, 1
      %s107 = scalar_select %p104, %s105, %s106
      %p110 = pneg %p104
      %p111 = scmp.eq.s32.totalorder %s18, 1
      %p112 = por %p110, %p111
      %p113 = scmp.ne.s32.totalorder %s105, %s108
      %p114 = scmp.eq.s32.totalorder %s18, 0
      %p115 = por %p113, %p114
      %p116 = scmp.ne.s32.totalorder %s105, %s108
      %p117 = scmp.eq.s32.totalorder %s23, 1
      %p118 = por %p116, %p117
      %p119 = scmp.ne.s32.totalorder %s108, %s109
      %p120 = scmp.eq.s32.totalorder %s23, 0
      %p121 = por %p119, %p120
      %p122 = scmp.ne.s32.totalorder %s108, %s109
      %p123 = scmp.eq.s32.totalorder %s24, 1
      %p124 = por %p122, %p123
      %p126 = scmp.ne.s32.totalorder %s109, %s125
      %p127 = scmp.eq.s32.totalorder %s24, 0
      %p128 = por %p126, %p127
      %s130 = sadd.s32 %s129, 1
      %p133 = scmp.eq.s32.totalorder %s18, 1
      %p134 = scmp.ne.s32.totalorder %s129, %s131
      %p135 = scmp.eq.s32.totalorder %s18, 0
      %p136 = por %p134, %p135
      %p137 = scmp.ne.s32.totalorder %s129, %s131
      %p138 = scmp.eq.s32.totalorder %s23, 1
      %p139 = por %p137, %p138
      %p140 = scmp.ne.s32.totalorder %s131, %s132
      %p141 = scmp.eq.s32.totalorder %s23, 0
      %p142 = por %p140, %p141
      %p143 = scmp.ne.s32.totalorder %s131, %s132
      %p144 = scmp.eq.s32.totalorder %s24, 1
      %p145 = por %p143, %p144
      %p147 = scmp.ne.s32.totalorder %s132, %s146
      %p148 = scmp.eq.s32.totalorder %s24, 0
      %p149 = por %p147, %p148
      %s151 = sadd.s32 %s150, 1
      %p154 = scmp.eq.s32.totalorder %s18, 1
      %p155 = scmp.ne.s32.totalorder %s150, %s152
      %p156 = scmp.eq.s32.totalorder %s18, 0
      %p157 = por %p155, %p156
      %p158 = scmp.ne.s32.totalorder %s150, %s152
      %p159 = scmp.eq.s32.totalorder %s23, 1
      %p160 = por %p158, %p159
      %p161 = scmp.ne.s32.totalorder %s152, %s153
      %p162 = scmp.eq.s32.totalorder %s23, 0
      %p163 = por %p161, %p162
      %p164 = scmp.ne.s32.totalorder %s152, %s153
      %p165 = scmp.eq.s32.totalorder %s24, 1
      %p166 = por %p164, %p165
      %p168 = scmp.ne.s32.totalorder %s153, %s167
      %p169 = scmp.eq.s32.totalorder %s24, 0
      %p170 = por %p168, %p169
      %s172 = sadd.s32 %s171, 1
      %p175 = scmp.eq.s32.totalorder %s18, 1
      %p176 = scmp.ne.s32.totalorder %s171, %s173
      %p177 = scmp.eq.s32.totalorder %s18, 0
      %p178 = por %p176, %p177
      %p179 = scmp.ne.s32.totalorder %s171, %s173
      %p180 = scmp.eq.s32.totalorder %s23, 1
      %p181 = por %p179, %p180
      %p182 = scmp.ne.s32.totalorder %s173, %s174
      %p183 = scmp.eq.s32.totalorder %s23, 0
      %p184 = por %p182, %p183
      %p185 = scmp.ne.s32.totalorder %s173, %s174
      %p186 = scmp.eq.s32.totalorder %s24, 1
      %p187 = por %p185, %p186
      %p189 = scmp.ne.s32.totalorder %s174, %s188
      %p190 = scmp.eq.s32.totalorder %s24, 0
      %p191 = por %p189, %p190
      %s192 = ssub.s32 %s25, %s44
      %s193 = ssub.s32 %s26, %s40
      %s194 = sor.u32 %s192, %s193
      %p195 = scmp.eq.s32.totalorder %s194, 0
      %s197 = sadd.s32 %s196, 1
      %s198 = scalar_select %p195, %s196, %s197
      %p201 = pneg %p195
      %p202 = scmp.eq.s32.totalorder %s18, 1
      %p203 = por %p201, %p202
      %p204 = scmp.ne.s32.totalorder %s196, %s199
      %p205 = scmp.eq.s32.totalorder %s18, 0
      %p206 = por %p204, %p205
      %p207 = scmp.ne.s32.totalorder %s196, %s199
      %p208 = scmp.eq.s32.totalorder %s23, 1
      %p209 = por %p207, %p208
      %p210 = scmp.ne.s32.totalorder %s199, %s200
      %p211 = scmp.eq.s32.totalorder %s23, 0
      %p212 = por %p210, %p211
      %p213 = scmp.ne.s32.totalorder %s199, %s200
      %p214 = scmp.eq.s32.totalorder %s24, 1
      %p215 = por %p213, %p214
      %p217 = scmp.ne.s32.totalorder %s200, %s216
      %p218 = scmp.eq.s32.totalorder %s24, 0
      %p219 = por %p217, %p218
      %p220 = scmp.le.s32.totalorder 1, %s18
      %p221 = scmp.lt.s32.totalorder %s18, 3
      %p222 = pnand %p220, %p221
      %p223 = pneg %p222
      // Predicated region
      $region9: #{tpu_custom_call.1} parent=5 // pred_check
        _
      $region10: #{tpu_custom_call.1} parent=5 // pred_check_branch
        %225 = sbr.rel (%p222) target = $region12
      $region11: #{tpu_custom_call.1} parent=5 // pred_region
        %s226 = ssub.s32 %s18, 1
        // Predicated region
        $region13: #{tpu_custom_call.1} parent=11 // pred_check
          %p227 = pneg %p142
        $region14: #{tpu_custom_call.1} parent=11 // pred_check_branch
          %229 = sbr.rel (%p227) target = $region16
        $region15: #{tpu_custom_call.1} parent=11 // pred_region
          _
        $region16: #{tpu_custom_call.1} parent=11 // pred_fallthru
          _
        // Predicated region
        $region17: #{tpu_custom_call.1} parent=11 // pred_check
          %p230 = pneg %p163
        $region18: #{tpu_custom_call.1} parent=11 // pred_check_branch
          %232 = sbr.rel (%p230) target = $region20
        $region19: #{tpu_custom_call.1} parent=11 // pred_region
          _
        $region20: #{tpu_custom_call.1} parent=11 // pred_fallthru
          _
        // Predicated region
        $region21: #{tpu_custom_call.1} parent=11 // pred_check
          %p233 = pneg %p184
        $region22: #{tpu_custom_call.1} parent=11 // pred_check_branch
          %235 = sbr.rel (%p233) target = $region24
        $region23: #{tpu_custom_call.1} parent=11 // pred_region
          _
        $region24: #{tpu_custom_call.1} parent=11 // pred_fallthru
          _
      $region12: #{tpu_custom_call.1} parent=5 // pred_fallthru
        _
      %p236 = scmp.lt.s32.totalorder %s18, 2
      // Predicated region
      $region25: #{tpu_custom_call.1} parent=5 // pred_check
        %p237 = pneg %p236
      $region26: #{tpu_custom_call.1} parent=5 // pred_check_branch
        %239 = sbr.rel (%p237) target = $region28
      $region27: #{tpu_custom_call.1} parent=5 // pred_region
        // Predicated region
        $region29: #{tpu_custom_call.1} parent=27 // pred_check
          %p240 = pneg %p59
        $region30: #{tpu_custom_call.1} parent=27 // pred_check_branch
          %242 = sbr.rel (%p240) target = $region32
        $region31: #{tpu_custom_call.1} parent=27 // pred_region
          %s243 = sand.u32 %s49, 1
          %s244 = scalar_lea.sflag [#allocation4], %s243
          %s245 = sand.u32 %s49, 1
          %s246 = smul.addr %s245, 8
          %s247 = scalar_lea.vmem [#allocation3], %s246
          %s248 = smul.u32 2, %s26
          %s250 = ssub.s32 128, 128
          %251 = vsyncadd %s244, %s250
          %s252 = smul.addr %s25, 2
          %s253 = sadd.s32 %s248, %s252
          %s254 = smul.addr %s253, 64
          %s255 = scalar_lea.hbm %s0, %s254
          %s257 = sshll.u32 %s247, 4
          %s258 = int_to_ptr.vmem [resolvable:$true] %s257
          %260 = dma.hbm_to_vmem [thread:$0]  %s255, 128, %s258, %s244
        $region32: #{tpu_custom_call.1} parent=27 // pred_fallthru
          _
        // Predicated region
        $region33: #{tpu_custom_call.1} parent=27 // pred_check
          %p261 = pneg %p87
        $region34: #{tpu_custom_call.1} parent=27 // pred_check_branch
          %263 = sbr.rel (%p261) target = $region36
        $region35: #{tpu_custom_call.1} parent=27 // pred_region
          %p264 = scmp.lt.s32.totalorder %s25, 1
          %s265 = scalar_select %p264, %s25, 1
          %p266 = scmp.lt.s32.totalorder %s27, 0
          %s267 = scalar_select %p266, %s27, 0
          %s268 = sadd.s32 %s267, %s265
          %s269 = scalar_lea.vmem %s1, %s268
        $region36: #{tpu_custom_call.1} parent=27 // pred_fallthru
          _
        // Predicated region
        $region37: #{tpu_custom_call.1} parent=27 // pred_check
          %p270 = pneg %p115
        $region38: #{tpu_custom_call.1} parent=27 // pred_check_branch
          %272 = sbr.rel (%p270) target = $region40
        $region39: #{tpu_custom_call.1} parent=27 // pred_region
          %p273 = scmp.lt.s32.totalorder %s25, 1
          %s274 = scalar_select %p273, %s25, 1
          %p275 = scmp.lt.s32.totalorder %s27, 0
          %s276 = scalar_select %p275, %s27, 0
          %s277 = sadd.s32 %s276, %s274
          %s278 = scalar_lea.vmem %s2, %s277
        $region40: #{tpu_custom_call.1} parent=27 // pred_fallthru
          _
      $region28: #{tpu_custom_call.1} parent=5 // pred_fallthru
        _
      %p279 = scmp.le.s32.totalorder 1, %s18
      %p280 = scmp.lt.s32.totalorder %s18, 3
      %p281 = pnand %p279, %p280
      %p282 = pneg %p281
      // Predicated region
      $region41: #{tpu_custom_call.1} parent=5 // pred_check
        _
      $region42: #{tpu_custom_call.1} parent=5 // pred_check_branch
        %284 = sbr.rel (%p281) target = $region44
      $region43: #{tpu_custom_call.1} parent=5 // pred_region
        %s285 = ssub.s32 %s18, 1
        %s286 = sand.u32 %s52, 1
        %s287 = scalar_lea.sflag [#allocation4], %s286
        %s288 = sand.u32 %s52, 1
        %s289 = smul.addr %s288, 8
        %s290 = scalar_lea.vmem [#allocation3], %s289
        // Predicated region
        $region45: #{tpu_custom_call.1} parent=43 // pred_check
          %p291 = pneg %p65
        $region46: #{tpu_custom_call.1} parent=43 // pred_check_branch
          %293 = sbr.rel (%p291) target = $region48
        $region47: #{tpu_custom_call.1} parent=43 // pred_region
          %294 = dma.done %s287, 128
        $region48: #{tpu_custom_call.1} parent=43 // pred_fallthru
          _
        %s295 = sand.u32 %s52, 1
        %s296 = scalar_lea.sflag [#allocation4], %s295
        %s297 = sand.u32 %s52, 1
        %s298 = smul.addr %s297, 8
        %s299 = scalar_lea.vmem [#allocation3], %s298
        %p300 = pneg %p65
        %p301 = pneg %p62
        %p302 = scmp.lt.s32.totalorder %s28, 1
        %s303 = scalar_select %p302, %s28, 1
        %p304 = scmp.lt.s32.totalorder %s30, 0
        %s305 = scalar_select %p304, %s30, 0
        %s306 = sadd.s32 %s305, %s303
        %s307 = scalar_lea.vmem %s1, %s306
        %p308 = pneg %p93
        %p309 = pneg %p90
        %p310 = scmp.lt.s32.totalorder %s28, 1
        %s311 = scalar_select %p310, %s28, 1
        %p312 = scmp.lt.s32.totalorder %s30, 0
        %s313 = scalar_select %p312, %s30, 0
        %s314 = sadd.s32 %s313, %s311
        %s315 = scalar_lea.vmem %s2, %s314
        %p316 = pneg %p121
        %p317 = pneg %p118
        %p318 = pneg %p142
        %p319 = pneg %p139
        %p320 = pneg %p163
        %p321 = pneg %p160
        %p322 = pneg %p184
        %p323 = pneg %p181
        %p324 = pneg %p212
        %p325 = pneg %p209
        %s326 = sand.u32 %s199, 1
        %s327 = scalar_lea.sflag [#allocation5], %s326
        %s328 = sand.u32 %s199, 1
        %s329 = smul.addr %s328, 8
        %s330 = scalar_lea.vmem [#allocation6], %s329
        %s331 = smul.u32 2, %s29
        %p332 = scmp.lt.s32.totalorder %s28, 1
        %s333 = scalar_select %p332, %s28, 1
        %p334 = scmp.lt.s32.totalorder %s30, 0
        %s335 = scalar_select %p334, %s30, 0
        %s336 = sadd.s32 %s335, %s333
        %s337 = scalar_lea.vmem %s1, %s336
        %p338 = scmp.lt.s32.totalorder %s28, 1
        %s339 = scalar_select %p338, %s28, 1
        %p340 = scmp.lt.s32.totalorder %s30, 0
        %s341 = scalar_select %p340, %s30, 0
        %s342 = sadd.s32 %s341, %s339
        %s343 = scalar_lea.vmem %s2, %s342
        %s344 = smul.u32 2, %s29
        %v346 = vld [vmem:[%s290] sm:$0xff]
        %v347 = vld [vmem:[%s4] sm:$0xf]
        %349 = vset.pattern.permute.xlu0 0
        %350 = vperm.xlu0 %349, %v347
        %v351 = vpop.permute.xlu0 %350
        %v353 = vunpack.c.l.s4 839922192
        %v354 = vunpack.c.0.s8 %v353
        %v355 = vlaneseq
        %v356 = vshrl.u32 %v355, 7
        %v357 = vsub.s32 %v354, %v356
        %v358 = vrot.slane %v351, %v357
        %v360 = vmul.f32 %v346, %v358
        %v362 = vcombine.high %v360, %v360
        %vm364 = vcmask 1043456
        %v365 = vsel %vm364, %v360, 0.0
        %v366 = vrot.slane %v365, 4
        %v367 = vadd.f32 %v365, %v366
        %v368 = vrot.slane %v367, 2
        %v369 = vadd.f32 %v367, %v368
        %v370 = vrot.slane %v369, 1
        %v371 = vadd.f32 %v369, %v370
        %v372 = vsel %vm364, %v362, 0.0
        %v373 = vrot.slane %v372, 4
        %v374 = vadd.f32 %v372, %v373
        %v375 = vrot.slane %v374, 2
        %v376 = vadd.f32 %v374, %v375
        %v377 = vrot.slane %v376, 1
        %v378 = vadd.f32 %v376, %v377
        %v379 = vld [vmem:[%s337] sm:$0x1]
        %380 = vxpose.xlu0.b32.start [1/16] %v379, 128
        %381 = vxpose.xlu0.b32.cont [2/16] 0.0, 128
        %382 = vxpose.xlu0.b32.cont [3/16] 0.0, 128
        %383 = vxpose.xlu0.b32.cont [4/16] 0.0, 128
        %384 = vxpose.xlu0.b32.cont [5/16] 0.0, 128
        %385 = vxpose.xlu0.b32.cont [6/16] 0.0, 128
        %386 = vxpose.xlu0.b32.cont [7/16] 0.0, 128
        %387 = vxpose.xlu0.b32.cont [8/16] 0.0, 128
        %388 = vxpose.xlu0.b32.cont [9/16] 0.0, 128
        %389 = vxpose.xlu0.b32.cont [10/16] 0.0, 128
        %390 = vxpose.xlu0.b32.cont [11/16] 0.0, 128
        %391 = vxpose.xlu0.b32.cont [12/16] 0.0, 128
        %392 = vxpose.xlu0.b32.cont [13/16] 0.0, 128
        %393 = vxpose.xlu0.b32.cont [14/16] 0.0, 128
        %394 = vxpose.xlu0.b32.cont [15/16] 0.0, 128
        %395 = vxpose.xlu0.b32.end [16/16] 0.0, 128
        %v396 = vpop.trf.xlu0
        %v397 = vpop.trf.xlu0
        %v398 = vpop.trf.xlu0
        %v399 = vpop.trf.xlu0
        %v400 = vpop.trf.xlu0
        %v401 = vpop.trf.xlu0
        %v402 = vpop.trf.xlu0
        %v403 = vpop.trf.xlu0
        %v404 = vpop.trf.xlu0
        %v405 = vpop.trf.xlu0
        %v406 = vpop.trf.xlu0
        %v407 = vpop.trf.xlu0
        %v408 = vpop.trf.xlu0
        %v409 = vpop.trf.xlu0
        %v410 = vpop.trf.xlu0
        %v411 = vpop.trf.xlu0
        %v412 = vpack.c.bf16 %v397, %v396
        %v413 = vpack.c.bf16 %v399, %v398
        %v414 = vpack.c.bf16 %v401, %v400
        %v415 = vpack.c.bf16 %v403, %v402
        %v416 = vpack.c.bf16 %v371, %v371
        %v417 = vpack.c.bf16 %v378, %v378
        %419 = vset.pattern.permute.xlu0 0
        %420 = vperm.xlu0 %419, %v412
        %v421 = vpop.permute.xlu0 %420
        %424 = vset.pattern.permute.xlu0 0
        %425 = vperm.xlu0 %424, %v413
        %v426 = vpop.permute.xlu0 %425
        %429 = vset.pattern.permute.xlu0 0
        %430 = vperm.xlu0 %429, %v414
        %v431 = vpop.permute.xlu0 %430
        %434 = vset.pattern.permute.xlu0 0
        %435 = vperm.xlu0 %434, %v415
        %v436 = vpop.permute.xlu0 %435
        %v438 = vadd.bf16 %v421, %v416
        %v439 = vadd.bf16 %v421, %v417
        %v440 = vadd.bf16 %v426, %v416
        %v441 = vadd.bf16 %v426, %v417
        %v442 = vadd.bf16 %v431, %v416
        %v443 = vadd.bf16 %v431, %v417
        %v444 = vadd.bf16 %v436, %v416
        %v445 = vadd.bf16 %v436, %v417
        %v446 = vmax.bf16 %v438, 0
        %v447 = vmax.bf16 %v439, 0
        %v448 = vmax.bf16 %v440, 0
        %v449 = vmax.bf16 %v441, 0
        %v450 = vmax.bf16 %v442, 0
        %v451 = vmax.bf16 %v443, 0
        %v452 = vmax.bf16 %v444, 0
        %v453 = vmax.bf16 %v445, 0
        %v454 = vld [vmem:[%s343] sm:$0x1]
        %vm455 = vcmask 523264
        %v457 = vsel %vm455, %v454, 0
        %459 = vmatprep.subr.bf16.mxu0 %v447
        %460 = vmatpush1.bf16.msra.mxu0 %v446
        %461 = vmatprep.subr.bf16.mxu0 %v449
        %462 = vmatpush1.bf16.msra.mxu0 %v448
        %463 = vmatprep.subr.bf16.mxu0 %v451
        %464 = vmatpush1.bf16.msra.mxu0 %v450
        %465 = vmatprep.subr.bf16.mxu0 %v453
        %466 = vmatpush1.bf16.msra.mxu0 %v452
        %467 = vmatprep.subr.bf16.mxu0 0
        %468 = vmatpush1.bf16.msra.mxu0 0
        %469 = vmatprep.subr.bf16.mxu0 0
        %470 = vmatpush1.bf16.msra.mxu0 0
        %471 = vmatprep.subr.bf16.mxu0 0
        %472 = vmatpush1.bf16.msra.mxu0 0
        %473 = vmatprep.subr.bf16.mxu0 0
        %474 = vmatpush1.bf16.msra.mxu0 0
        %475 = vmatprep.subr.bf16.mxu0 0
        %476 = vmatpush1.bf16.msra.mxu0 0
        %477 = vmatprep.subr.bf16.mxu0 0
        %478 = vmatpush1.bf16.msra.mxu0 0
        %479 = vmatprep.subr.bf16.mxu0 0
        %480 = vmatpush1.bf16.msra.mxu0 0
        %481 = vmatprep.subr.bf16.mxu0 0
        %482 = vmatpush1.bf16.msra.mxu0 0
        %483 = vmatprep.subr.bf16.mxu0 0
        %484 = vmatpush1.bf16.msra.mxu0 0
        %485 = vmatprep.subr.bf16.mxu0 0
        %486 = vmatpush1.bf16.msra.mxu0 0
        %487 = vmatprep.subr.bf16.mxu0 0
        %488 = vmatpush1.bf16.msra.mxu0 0
        %489 = vmatprep.subr.bf16.mxu0 0
        %490 = vmatpush1.bf16.msra.mxu0 0
        %491 = vmatprep.mubr.bf16.mxu0 0
        %492 = vmatmul.mubr.bf16.gmra.mrb[0].mxu0 %v457
        %v493 = vpop.f32.mrb[0].mxu0
        %v494 = vadd.f32 0.0, %v493
        %v495 = vpop.f32.mrb[0].mxu0
        %v496 = vadd.f32 0.0, %v495
        %v497 = vpop.f32.mrb[0].mxu0
        %v498 = vpop.f32.mrb[0].mxu0
        %499 = vdwg.mxu0
        %p500 = scmp.eq.s32.totalorder %s30, 0
        // Predicated region
        $region49: #{tpu_custom_call.1} parent=43 // pred_check
          %p501 = pneg %p500
        $region50: #{tpu_custom_call.1} parent=43 // pred_check_branch
          %503 = sbr.rel (%p501) target = $region52
        $region51: #{tpu_custom_call.1} parent=43 // pred_region
          %v506 = vcombine.low %v494, %v496
          %v508 = vunpack.c.l.s4 1983009808
          %v509 = vunpack.c.0.s8 %v508
          %v510 = vlaneseq
          %v511 = vshrl.u32 %v510, 7
          %v512 = vsub.s32 %v509, %v511
          %v513 = vrot.slane %v506, %v512
          %515 = vst [vmem:[#allocation2] sm:$0xf] %v513
        $region52: #{tpu_custom_call.1} parent=43 // pred_fallthru
          _
        %p516 = scmp.ne.s32.totalorder %s30, 0
        // Predicated region
        $region53: #{tpu_custom_call.1} parent=43 // pred_check
          %p517 = pneg %p516
        $region54: #{tpu_custom_call.1} parent=43 // pred_check_branch
          %519 = sbr.rel (%p517) target = $region56
        $region55: #{tpu_custom_call.1} parent=43 // pred_region
          %v520 = vld [vmem:[#allocation2] sm:$0xf]
          %v523 = vcombine.low %v494, %v496
          %v525 = vunpack.c.l.s4 1983009808
          %v526 = vunpack.c.0.s8 %v525
          %v527 = vlaneseq
          %v528 = vshrl.u32 %v527, 7
          %v529 = vsub.s32 %v526, %v528
          %v530 = vrot.slane %v523, %v529
          %v532 = vadd.f32 %v520, %v530
          %533 = vst [vmem:[#allocation2] sm:$0xf] %v532
        $region56: #{tpu_custom_call.1} parent=43 // pred_fallthru
          _
        // Predicated region
        $region57: #{tpu_custom_call.1} parent=43 // pred_check
          %p534 = pneg %p500
        $region58: #{tpu_custom_call.1} parent=43 // pred_check_branch
          %536 = sbr.rel (%p534) target = $region60
        $region59: #{tpu_custom_call.1} parent=43 // pred_region
          %v537 = vld [vmem:[%s3] sm:$0xf]
          %v538 = vld [vmem:[#allocation2] sm:$0xf]
          %v541 = vunpack.c.l.s4 1983009808
          %v542 = vunpack.c.0.s8 %v541
          %v543 = vlaneseq
          %v544 = vshrl.u32 %v543, 7
          %v545 = vsub.s32 %v542, %v544
          %v546 = vrot.slane %v538, %v545
          %v547 = vcombine.high %v546, %v546
          %vm548 = vcmask 15360
          %v550 = vsel %vm548, %v537, 0
          %vm552 = vcmask 1041408
          %v553 = vsel %vm552, %v546, 0
          %v555 = vsel %vm552, %v547, 0
          %557 = vmatprep.subr.mxu0 %v555
          %558 = vmatpush1.msra.mxu0 %v553
          %559 = vmatprep.subr.mxu0 0.0
          %560 = vmatpush1.msra.mxu0 0.0
          %561 = vmatprep.subr.mxu0 0.0
          %562 = vmatpush1.msra.mxu0 0.0
          %563 = vmatprep.subr.mxu0 0.0
          %564 = vmatpush1.msra.mxu0 0.0
          %565 = vmatprep.subr.mxu0 0.0
          %566 = vmatpush1.msra.mxu0 0.0
          %567 = vmatprep.subr.mxu0 0.0
          %568 = vmatpush1.msra.mxu0 0.0
          %569 = vmatprep.subr.mxu0 0.0
          %570 = vmatpush1.msra.mxu0 0.0
          %571 = vmatprep.subr.mxu0 0.0
          %572 = vmatpush1.msra.mxu0 0.0
          %573 = vmatprep.subr.mxu0 0.0
          %574 = vmatpush1.msra.mxu0 0.0
          %575 = vmatprep.subr.mxu0 0.0
          %576 = vmatpush1.msra.mxu0 0.0
          %577 = vmatprep.subr.mxu0 0.0
          %578 = vmatpush1.msra.mxu0 0.0
          %579 = vmatprep.subr.mxu0 0.0
          %580 = vmatpush1.msra.mxu0 0.0
          %581 = vmatprep.subr.mxu0 0.0
          %582 = vmatpush1.msra.mxu0 0.0
          %583 = vmatprep.subr.mxu0 0.0
          %584 = vmatpush1.msra.mxu0 0.0
          %585 = vmatprep.subr.mxu0 0.0
          %586 = vmatpush1.msra.mxu0 0.0
          %587 = vmatprep.subr.mxu0 0.0
          %588 = vmatpush1.msra.mxu0 0.0
          %589 = vmatprep.subr.mxu0 0.0
          %590 = vmatpush1.msra.mxu0 0.0
          %591 = vmatprep.subr.mxu0 0.0
          %592 = vmatpush1.msra.mxu0 0.0
          %593 = vmatprep.subr.mxu0 0.0
          %594 = vmatpush1.msra.mxu0 0.0
          %595 = vmatprep.subr.mxu0 0.0
          %596 = vmatpush1.msra.mxu0 0.0
          %597 = vmatprep.subr.mxu0 0.0
          %598 = vmatpush1.msra.mxu0 0.0
          %599 = vmatprep.subr.mxu0 0.0
          %600 = vmatpush1.msra.mxu0 0.0
          %601 = vmatprep.subr.mxu0 0.0
          %602 = vmatpush1.msra.mxu0 0.0
          %603 = vmatprep.subr.mxu0 0.0
          %604 = vmatpush1.msra.mxu0 0.0
          %605 = vmatprep.subr.mxu0 0.0
          %606 = vmatpush1.msra.mxu0 0.0
          %607 = vmatprep.subr.mxu0 0.0
          %608 = vmatpush1.msra.mxu0 0.0
          %609 = vmatprep.subr.mxu0 0.0
          %610 = vmatpush1.msra.mxu0 0.0
          %611 = vmatprep.subr.mxu0 0.0
          %612 = vmatpush1.msra.mxu0 0.0
          %613 = vmatprep.subr.mxu0 0.0
          %614 = vmatpush1.msra.mxu0 0.0
          %615 = vmatprep.subr.mxu0 0.0
          %616 = vmatpush1.msra.mxu0 0.0
          %617 = vmatprep.subr.mxu0 0.0
          %618 = vmatpush1.msra.mxu0 0.0
          %619 = vmatprep.subr.mxu0 0.0
          %620 = vmatpush1.msra.mxu0 0.0
          %621 = vmatprep.mubr.f32.mxu0 0.0
          %622 = vmatmul.mubr.f32.gmra.mrb[0].mxu0 %v550
          %v623 = vpop.f32.mrb[0].mxu0
          %v624 = vadd.f32 0.0, %v623
          %v625 = vpop.f32.mrb[0].mxu0
          %v626 = vadd.f32 0.0, %v625
          %627 = vdwg.mxu0
          %v630 = vcombine.low %v624, %v626
          %v632 = vadd.f32 %v346, %v630
          %v633 = vld [vmem:[%s5] sm:$0xf]
          %635 = vset.pattern.permute.xlu0 0
          %636 = vperm.xlu0 %635, %v633
          %v637 = vpop.permute.xlu0 %636
          %v639 = vunpack.c.l.s4 839922192
          %v640 = vunpack.c.0.s8 %v639
          %v641 = vlaneseq
          %v642 = vshrl.u32 %v641, 7
          %v643 = vsub.s32 %v640, %v642
          %v644 = vrot.slane %v637, %v643
          %v646 = vadd.f32 %v632, %v644
          %647 = vst [vmem:[%s330] sm:$0xff] %v646
        $region60: #{tpu_custom_call.1} parent=43 // pred_fallthru
          _
        %s648 = sand.u32 %s199, 1
        %s649 = scalar_lea.sflag [#allocation5], %s648
        %s650 = sand.u32 %s199, 1
        %s651 = smul.addr %s650, 8
        %s652 = scalar_lea.vmem [#allocation6], %s651
        // Predicated region
        $region61: #{tpu_custom_call.1} parent=43 // pred_check
          %p653 = pneg %p209
        $region62: #{tpu_custom_call.1} parent=43 // pred_check_branch
          %655 = sbr.rel (%p653) target = $region64
        $region63: #{tpu_custom_call.1} parent=43 // pred_region
          %s656 = smul.u32 2, %s29
          %s658 = ssub.s32 128, 128
          %659 = vsyncadd %s649, %s658
          %s660 = smul.addr %s28, 2
          %s661 = sadd.s32 %s656, %s660
          %s662 = smul.addr %s661, 64
          %s663 = scalar_lea.hbm %s6, %s662
          %s665 = sshll.u32 %s652, 4
          %s666 = int_to_ptr.vmem [resolvable:$true] %s665
          %668 = dma.vmem_to_hbm [thread:$0]  %s666, 128, %s663, %s649
        $region64: #{tpu_custom_call.1} parent=43 // pred_fallthru
          _
      $region44: #{tpu_custom_call.1} parent=5 // pred_fallthru
        _
      %p669 = scmp.le.s32.totalorder 2, %s18
      // Predicated region
      $region65: #{tpu_custom_call.1} parent=5 // pred_check
        %p670 = pneg %p669
      $region66: #{tpu_custom_call.1} parent=5 // pred_check_branch
        %672 = sbr.rel (%p670) target = $region68
      $region67: #{tpu_custom_call.1} parent=5 // pred_region
        %s673 = ssub.s32 %s18, 2
        // Predicated region
        $region69: #{tpu_custom_call.1} parent=67 // pred_check
          %p674 = pneg %p215
        $region70: #{tpu_custom_call.1} parent=67 // pred_check_branch
          %676 = sbr.rel (%p674) target = $region72
        $region71: #{tpu_custom_call.1} parent=67 // pred_region
          %s677 = sand.u32 %s200, 1
          %s678 = scalar_lea.sflag [#allocation5], %s677
          %s679 = sand.u32 %s200, 1
          %s680 = smul.addr %s679, 8
          %s681 = scalar_lea.vmem [#allocation6], %s680
          %682 = dma.done %s678, 128
        $region72: #{tpu_custom_call.1} parent=67 // pred_fallthru
          _
      $region68: #{tpu_custom_call.1} parent=5 // pred_fallthru
        _
    $region6: #{tpu_custom_call.1} parent=1 // loop_footer
      %s22 = sadd.s32 1, %s18
    $region7: #{tpu_custom_call.1} parent=1 // loop_footer_branch
      %17 = sbr.rel target = $region3
    $region8: #{tpu_custom_call.1} parent=1 // loop_exit
      _
    %683 = vsyncpa [#allocation4], 1
    %s684 = scalar_lea.sflag [#allocation4], 1
    %685 = vsyncpa %s684, 1
    %686 = vsyncpa [#allocation5], 1
    %s687 = scalar_lea.sflag [#allocation5], 1
    %688 = vsyncpa %s687, 1

</llo_original>
